<compile_context>
chip_gen: v7x
topology: tpu7x:2x2x1
jax: 0.10.0
libtpu: 0.0.40
codegen_flags: <defaults>
</compile_context>

<pallas_src>
import functools

import jax
import jax.numpy as jnp
import numpy as np
from jax.experimental import pallas as pl
from jax.experimental.pallas import tpu as pltpu


def _loss_freq_kernel(x_ref, basis_ref, mask_ref, out_ref, acc_ref, *,
                      inv_hw, hw_blk):
    """One grid step: (sample i, HW tile k).

    x_ref    : [1, T, hw_blk]  input tile (native dtype)
    basis_ref: [T, n_pad]      cols [0,half)=cos, [half,2*half)=-sin, rest 0
    mask_ref : [1, n_pad]      1.0 on columns contributing to the lf:hf band
    out_ref  : [1, 1, 128]     per-sample (total/band - 1), lane-broadcast
    acc_ref  : [T, 128] f32    lane-partitioned running spatial sum
    """
    k = pl.program_id(1)

    @pl.when(k == 0)
    def _init():
        acc_ref[...] = jnp.zeros_like(acc_ref)

    if hw_blk % 128 == 0:
        # Lane-dense accumulation: aligned 128-lane chunk loads + plain VPU
        # adds; no per-tile cross-lane (XLU) reduce, no masked stores.
        n_chunks = hw_blk // 128
        partial = x_ref[0, :, 0:128].astype(jnp.float32)              # [T, 128]
        for j in range(1, n_chunks):
            partial = partial + x_ref[0, :, j * 128:(j + 1) * 128].astype(jnp.float32)
        acc_ref[...] += partial
    else:
        # Non-128-divisible HW => single full-extent tile: one cross-lane
        # reduce, deposited into lane 0 so the finalize path stays uniform.
        col = jnp.sum(x_ref[0].astype(jnp.float32), axis=-1, keepdims=True)
        lane0 = jax.lax.broadcasted_iota(jnp.int32, acc_ref.shape, 1) == 0
        acc_ref[...] += jnp.where(lane0, col, 0.0)

    @pl.when(k == pl.num_programs(1) - 1)
    def _finalize():
        # Turn_map_into_waves: spatial mean + temporal mean removal.
        # (the 1/std factor scales the PSD uniformly and cancels in total/band)
        spatial = jnp.sum(acc_ref[...], axis=-1, keepdims=True)       # [T, 1]
        w = spatial * inv_hw
        w = w - jnp.mean(w)                                           # zero the DC bin

        # Real DFT, lane-dense: broadcast-multiply the [T, n_pad] basis by the
        # wave column and reduce over the (sublane) time axis. Result row holds
        # re (cols [0,half)) and im (cols [half,2*half)) stacked; padded cols
        # contribute nothing.
        c = jnp.sum(basis_ref[...] * w, axis=0, keepdims=True)        # [1, n_pad]
        sq = c * c

        # total = sum_k (re_k^2 + im_k^2) over bins [0, T//2); the reference's
        # /max(psd) normalization cancels in this ratio.
        total = jnp.sum(sq, axis=-1, keepdims=True)                   # [1, 1]
        band = jnp.sum(sq * mask_ref[...], axis=-1, keepdims=True)    # [1, 1]
        # NOTE: a (near-)constant wave gives band ~ 0 -> inf/NaN, matching the
        # torch reference's degenerate behavior.
        ratio = total / band - 1.0
        out_ref[...] = jnp.broadcast_to(ratio.reshape(1, 1, 1), out_ref.shape)


def _pick_hw_block(hw, t, itemsize, target_tile_bytes=4 * 1024 * 1024):
    """Largest multiple of 128 dividing `hw` whose [T, hw_blk] tile stays under
    ~`target_tile_bytes` (never below 512 lanes when a bigger divisor exists);
    full extent when `hw` is not 128-aligned."""
    if hw % 128 != 0:
        return hw                      # full extent is always a legal block
    cap = max(512, ((target_tile_bytes // max(1, t * itemsize)) // 128) * 128)
    best = 128
    for cand in range(128, hw + 1, 128):
        if cand <= cap and hw % cand == 0:
            best = cand
    return best


def loss_freq(attns):
    """attns: [B, T, H, W] (f32 or bf16) -> scalar f32 loss."""
    B, T, H, W = attns.shape
    HW = H * W
    x = attns.reshape(B, T, HW)        # keep native dtype; cast inside kernel

    half = T // 2
    # lf/hf follow the torch reference: computed from the *full* FFT length.
    lf = int(0.5 * T / 30.0)
    hf = int(3.0 * T / 30.0)
    assert 0 <= lf < hf <= half, "sequence too short for the [lf, hf) band"

    # Transposed (cos | -sin) DFT basis, zero-padded to a lane-dense width.
    n_pad = max(128, ((2 * half + 127) // 128) * 128)
    t_idx = np.arange(T, dtype=np.float64)[:, None]
    k_idx = np.arange(half, dtype=np.float64)[None, :]
    ang = 2.0 * np.pi * t_idx * k_idx / float(T)
    basis = np.zeros((T, n_pad), dtype=np.float32)
    basis[:, :half] = np.cos(ang)
    basis[:, half:2 * half] = -np.sin(ang)
    basis = jnp.asarray(basis)

    band_mask = np.zeros((1, n_pad), dtype=np.float32)
    band_mask[0, lf:hf] = 1.0                       # re columns of the band bins
    band_mask[0, half + lf:half + hf] = 1.0         # im columns of the band bins
    band_mask = jnp.asarray(band_mask)

    itemsize = jnp.dtype(x.dtype).itemsize
    hw_blk = _pick_hw_block(HW, T, itemsize)
    n_hw = HW // hw_blk                              # hw_blk divides HW or == HW

    # Double-buffered x tile + basis/mask/out buffers + acc scratch must fit
    # every generation's scoped VMEM (limit set to 32 MiB below).
    est_vmem = (2 * T * hw_blk * itemsize            # x double buffer
                + 2 * (T + 1) * n_pad * 4            # basis + mask buffers
                + T * 128 * 4 + 2 * 128 * 4)         # acc scratch + out buffers
    assert est_vmem < 28 * 1024 * 1024, est_vmem

    kernel = functools.partial(_loss_freq_kernel,
                               inv_hw=1.0 / float(HW), hw_blk=hw_blk)
    out = pl.pallas_call(
        kernel,
        out_shape=jax.ShapeDtypeStruct((B, 1, 128), jnp.float32),
        grid_spec=pltpu.PrefetchScalarGridSpec(
            num_scalar_prefetch=0,
            grid=(B, n_hw),
            in_specs=[
                pl.BlockSpec((1, T, hw_blk), lambda i, k: (i, 0, k)),
                pl.BlockSpec((T, n_pad), lambda i, k: (0, 0)),
                pl.BlockSpec((1, n_pad), lambda i, k: (0, 0)),
            ],
            out_specs=pl.BlockSpec((1, 1, 128), lambda i, k: (i, 0, 0)),
            scratch_shapes=[pltpu.VMEM((T, 128), jnp.float32)],
        ),
        compiler_params=pltpu.CompilerParams(
            # B is independent work ("parallel": v7x's two TensorCores split it);
            # the HW axis is a reduction into VMEM scratch ("arbitrary").
            dimension_semantics=("parallel", "arbitrary"),
            # ~4 MiB double-buffered tiles fit every generation: overrides v5e's
            # 16 MiB scoped default, stays well under v7x's 64 MiB physical.
            vmem_limit_bytes=32 * 1024 * 1024,
        ),
    )(x, basis, band_mask)

    # Tiny final reduction over B (glue; kept outside so B can stay "parallel").
    return jnp.mean(out[:, 0, 0])


def _reference(attns):
    """Pure-numpy f64 reference mirroring the torch module."""
    x = np.asarray(attns, dtype=np.float64)
    B, T, H, W = x.shape
    waves = x.reshape(B, T, -1).mean(-1)
    waves = (waves - waves.mean(-1, keepdims=True)) / (
        waves.std(-1, keepdims=True) + 1e-8)
    psd = np.abs(np.fft.fft(waves, axis=-1)) ** 2
    half = T // 2
    lf = int(0.5 * T / 30.0)
    hf = int(3.0 * T / 30.0)
    psd = psd[:, :half]
    psd = psd / psd.max(-1, keepdims=True)
    loss = psd.sum(-1) / psd[:, lf:hf].sum(-1) - 1.0
    return float(loss.mean())


if __name__ == "__main__":
    key = jax.random.PRNGKey(0)
    # B=2 samples, T=64 frames (band [lf,hf) = [1,6) is non-empty), 64x64 maps
    # (HW=4096 -> a single ~1 MiB lane-dense tile; exercises the chunked
    # lane-dense accumulator and the finalize DFT epilogue).
    B, T, H, W = 2, 64, 64, 64
    attns = jax.random.uniform(key, (B, T, H, W), dtype=jnp.float32)

    loss = jax.jit(loss_freq)(attns)
    jax.block_until_ready(loss)

    np.testing.assert_allclose(float(loss), _reference(attns), rtol=1e-2, atol=1e-4)
    print("KERNEL_OK")
</pallas_src>

<mosaic_0001>
module attributes {stable_mosaic.version = 11 : i64} {
  func.func @_loss_freq_kernel(%arg0: i32, %arg1: i32, %arg2: memref<1x64x4096xf32, #tpu.memory_space<vmem>>, %arg3: memref<64x128xf32, #tpu.memory_space<vmem>>, %arg4: memref<1x128xf32, #tpu.memory_space<vmem>>, %arg5: memref<1x1x128xf32, #tpu.memory_space<vmem>>, %arg6: memref<64x128xf32, #tpu.memory_space<vmem>>) attributes {dimension_semantics = [#tpu.dimension_semantics<parallel>, #tpu.dimension_semantics<arbitrary>], iteration_bounds = array<i64: 2, 1>, scalar_prefetch = 0 : i64, scratch_operands = 1 : i64, tpu.core_type = #tpu.core_type<tc>, window_params = [{transform_indices = @transform_0, window_bounds = array<i64: 1, 64, 4096>}, {pipeline_mode = #tpu.pipeline_mode<synchronous>, transform_indices = @transform_1, window_bounds = array<i64: 64, 128>}, {pipeline_mode = #tpu.pipeline_mode<synchronous>, transform_indices = @transform_2, window_bounds = array<i64: 1, 128>}, {transform_indices = @transform_3, window_bounds = array<i64: 1, 1, 128>}]} {
    %c0_i32 = arith.constant 0 : i32
    %0 = arith.cmpi eq, %arg1, %c0_i32 : i32
    %1 = arith.extui %0 : i1 to i32
    %c0_i32_0 = arith.constant 0 : i32
    %2 = arith.cmpi ne, %1, %c0_i32_0 : i32
    scf.if %2 {
      %cst = arith.constant 0.000000e+00 : f32
      %104 = vector.broadcast %cst : f32 to vector<64x128xf32>
      %c0_71 = arith.constant 0 : index
      %c0_72 = arith.constant 0 : index
      %105 = vector.load %arg6[%c0_71, %c0_72] : memref<64x128xf32, #tpu.memory_space<vmem>>, vector<64x128xf32>
      tpu.vector_store %arg6[%c0_71, %c0_72], %104 {strides = array<i32>} : memref<64x128xf32, #tpu.memory_space<vmem>>, vector<64x128xf32>,
    } else {
    }
    %c0 = arith.constant 0 : index
    %c0_1 = arith.constant 0 : index
    %c0_2 = arith.constant 0 : index
    %3 = vector.load %arg2[%c0, %c0_1, %c0_2] : memref<1x64x4096xf32, #tpu.memory_space<vmem>>, vector<1x64x128xf32>
    %4 = vector.shape_cast %3 : vector<1x64x128xf32> to vector<64x128xf32>
    %c0_3 = arith.constant 0 : index
    %c0_4 = arith.constant 0 : index
    %c128 = arith.constant 128 : index
    %5 = vector.load %arg2[%c0_3, %c0_4, %c128] : memref<1x64x4096xf32, #tpu.memory_space<vmem>>, vector<1x64x128xf32>
    %6 = vector.shape_cast %5 : vector<1x64x128xf32> to vector<64x128xf32>
    %7 = arith.addf %4, %6 : vector<64x128xf32>
    %c0_5 = arith.constant 0 : index
    %c0_6 = arith.constant 0 : index
    %c256 = arith.constant 256 : index
    %8 = vector.load %arg2[%c0_5, %c0_6, %c256] : memref<1x64x4096xf32, #tpu.memory_space<vmem>>, vector<1x64x128xf32>
    %9 = vector.shape_cast %8 : vector<1x64x128xf32> to vector<64x128xf32>
    %10 = arith.addf %7, %9 : vector<64x128xf32>
    %c0_7 = arith.constant 0 : index
    %c0_8 = arith.constant 0 : index
    %c384 = arith.constant 384 : index
    %11 = vector.load %arg2[%c0_7, %c0_8, %c384] : memref<1x64x4096xf32, #tpu.memory_space<vmem>>, vector<1x64x128xf32>
    %12 = vector.shape_cast %11 : vector<1x64x128xf32> to vector<64x128xf32>
    %13 = arith.addf %10, %12 : vector<64x128xf32>
    %c0_9 = arith.constant 0 : index
    %c0_10 = arith.constant 0 : index
    %c512 = arith.constant 512 : index
    %14 = vector.load %arg2[%c0_9, %c0_10, %c512] : memref<1x64x4096xf32, #tpu.memory_space<vmem>>, vector<1x64x128xf32>
    %15 = vector.shape_cast %14 : vector<1x64x128xf32> to vector<64x128xf32>
    %16 = arith.addf %13, %15 : vector<64x128xf32>
    %c0_11 = arith.constant 0 : index
    %c0_12 = arith.constant 0 : index
    %c640 = arith.constant 640 : index
    %17 = vector.load %arg2[%c0_11, %c0_12, %c640] : memref<1x64x4096xf32, #tpu.memory_space<vmem>>, vector<1x64x128xf32>
    %18 = vector.shape_cast %17 : vector<1x64x128xf32> to vector<64x128xf32>
    %19 = arith.addf %16, %18 : vector<64x128xf32>
    %c0_13 = arith.constant 0 : index
    %c0_14 = arith.constant 0 : index
    %c768 = arith.constant 768 : index
    %20 = vector.load %arg2[%c0_13, %c0_14, %c768] : memref<1x64x4096xf32, #tpu.memory_space<vmem>>, vector<1x64x128xf32>
    %21 = vector.shape_cast %20 : vector<1x64x128xf32> to vector<64x128xf32>
    %22 = arith.addf %19, %21 : vector<64x128xf32>
    %c0_15 = arith.constant 0 : index
    %c0_16 = arith.constant 0 : index
    %c896 = arith.constant 896 : index
    %23 = vector.load %arg2[%c0_15, %c0_16, %c896] : memref<1x64x4096xf32, #tpu.memory_space<vmem>>, vector<1x64x128xf32>
    %24 = vector.shape_cast %23 : vector<1x64x128xf32> to vector<64x128xf32>
    %25 = arith.addf %22, %24 : vector<64x128xf32>
    %c0_17 = arith.constant 0 : index
    %c0_18 = arith.constant 0 : index
    %c1024 = arith.constant 1024 : index
    %26 = vector.load %arg2[%c0_17, %c0_18, %c1024] : memref<1x64x4096xf32, #tpu.memory_space<vmem>>, vector<1x64x128xf32>
    %27 = vector.shape_cast %26 : vector<1x64x128xf32> to vector<64x128xf32>
    %28 = arith.addf %25, %27 : vector<64x128xf32>
    %c0_19 = arith.constant 0 : index
    %c0_20 = arith.constant 0 : index
    %c1152 = arith.constant 1152 : index
    %29 = vector.load %arg2[%c0_19, %c0_20, %c1152] : memref<1x64x4096xf32, #tpu.memory_space<vmem>>, vector<1x64x128xf32>
    %30 = vector.shape_cast %29 : vector<1x64x128xf32> to vector<64x128xf32>
    %31 = arith.addf %28, %30 : vector<64x128xf32>
    %c0_21 = arith.constant 0 : index
    %c0_22 = arith.constant 0 : index
    %c1280 = arith.constant 1280 : index
    %32 = vector.load %arg2[%c0_21, %c0_22, %c1280] : memref<1x64x4096xf32, #tpu.memory_space<vmem>>, vector<1x64x128xf32>
    %33 = vector.shape_cast %32 : vector<1x64x128xf32> to vector<64x128xf32>
    %34 = arith.addf %31, %33 : vector<64x128xf32>
    %c0_23 = arith.constant 0 : index
    %c0_24 = arith.constant 0 : index
    %c1408 = arith.constant 1408 : index
    %35 = vector.load %arg2[%c0_23, %c0_24, %c1408] : memref<1x64x4096xf32, #tpu.memory_space<vmem>>, vector<1x64x128xf32>
    %36 = vector.shape_cast %35 : vector<1x64x128xf32> to vector<64x128xf32>
    %37 = arith.addf %34, %36 : vector<64x128xf32>
    %c0_25 = arith.constant 0 : index
    %c0_26 = arith.constant 0 : index
    %c1536 = arith.constant 1536 : index
    %38 = vector.load %arg2[%c0_25, %c0_26, %c1536] : memref<1x64x4096xf32, #tpu.memory_space<vmem>>, vector<1x64x128xf32>
    %39 = vector.shape_cast %38 : vector<1x64x128xf32> to vector<64x128xf32>
    %40 = arith.addf %37, %39 : vector<64x128xf32>
    %c0_27 = arith.constant 0 : index
    %c0_28 = arith.constant 0 : index
    %c1664 = arith.constant 1664 : index
    %41 = vector.load %arg2[%c0_27, %c0_28, %c1664] : memref<1x64x4096xf32, #tpu.memory_space<vmem>>, vector<1x64x128xf32>
    %42 = vector.shape_cast %41 : vector<1x64x128xf32> to vector<64x128xf32>
    %43 = arith.addf %40, %42 : vector<64x128xf32>
    %c0_29 = arith.constant 0 : index
    %c0_30 = arith.constant 0 : index
    %c1792 = arith.constant 1792 : index
    %44 = vector.load %arg2[%c0_29, %c0_30, %c1792] : memref<1x64x4096xf32, #tpu.memory_space<vmem>>, vector<1x64x128xf32>
    %45 = vector.shape_cast %44 : vector<1x64x128xf32> to vector<64x128xf32>
    %46 = arith.addf %43, %45 : vector<64x128xf32>
    %c0_31 = arith.constant 0 : index
    %c0_32 = arith.constant 0 : index
    %c1920 = arith.constant 1920 : index
    %47 = vector.load %arg2[%c0_31, %c0_32, %c1920] : memref<1x64x4096xf32, #tpu.memory_space<vmem>>, vector<1x64x128xf32>
    %48 = vector.shape_cast %47 : vector<1x64x128xf32> to vector<64x128xf32>
    %49 = arith.addf %46, %48 : vector<64x128xf32>
    %c0_33 = arith.constant 0 : index
    %c0_34 = arith.constant 0 : index
    %c2048 = arith.constant 2048 : index
    %50 = vector.load %arg2[%c0_33, %c0_34, %c2048] : memref<1x64x4096xf32, #tpu.memory_space<vmem>>, vector<1x64x128xf32>
    %51 = vector.shape_cast %50 : vector<1x64x128xf32> to vector<64x128xf32>
    %52 = arith.addf %49, %51 : vector<64x128xf32>
    %c0_35 = arith.constant 0 : index
    %c0_36 = arith.constant 0 : index
    %c2176 = arith.constant 2176 : index
    %53 = vector.load %arg2[%c0_35, %c0_36, %c2176] : memref<1x64x4096xf32, #tpu.memory_space<vmem>>, vector<1x64x128xf32>
    %54 = vector.shape_cast %53 : vector<1x64x128xf32> to vector<64x128xf32>
    %55 = arith.addf %52, %54 : vector<64x128xf32>
    %c0_37 = arith.constant 0 : index
    %c0_38 = arith.constant 0 : index
    %c2304 = arith.constant 2304 : index
    %56 = vector.load %arg2[%c0_37, %c0_38, %c2304] : memref<1x64x4096xf32, #tpu.memory_space<vmem>>, vector<1x64x128xf32>
    %57 = vector.shape_cast %56 : vector<1x64x128xf32> to vector<64x128xf32>
    %58 = arith.addf %55, %57 : vector<64x128xf32>
    %c0_39 = arith.constant 0 : index
    %c0_40 = arith.constant 0 : index
    %c2432 = arith.constant 2432 : index
    %59 = vector.load %arg2[%c0_39, %c0_40, %c2432] : memref<1x64x4096xf32, #tpu.memory_space<vmem>>, vector<1x64x128xf32>
    %60 = vector.shape_cast %59 : vector<1x64x128xf32> to vector<64x128xf32>
    %61 = arith.addf %58, %60 : vector<64x128xf32>
    %c0_41 = arith.constant 0 : index
    %c0_42 = arith.constant 0 : index
    %c2560 = arith.constant 2560 : index
    %62 = vector.load %arg2[%c0_41, %c0_42, %c2560] : memref<1x64x4096xf32, #tpu.memory_space<vmem>>, vector<1x64x128xf32>
    %63 = vector.shape_cast %62 : vector<1x64x128xf32> to vector<64x128xf32>
    %64 = arith.addf %61, %63 : vector<64x128xf32>
    %c0_43 = arith.constant 0 : index
    %c0_44 = arith.constant 0 : index
    %c2688 = arith.constant 2688 : index
    %65 = vector.load %arg2[%c0_43, %c0_44, %c2688] : memref<1x64x4096xf32, #tpu.memory_space<vmem>>, vector<1x64x128xf32>
    %66 = vector.shape_cast %65 : vector<1x64x128xf32> to vector<64x128xf32>
    %67 = arith.addf %64, %66 : vector<64x128xf32>
    %c0_45 = arith.constant 0 : index
    %c0_46 = arith.constant 0 : index
    %c2816 = arith.constant 2816 : index
    %68 = vector.load %arg2[%c0_45, %c0_46, %c2816] : memref<1x64x4096xf32, #tpu.memory_space<vmem>>, vector<1x64x128xf32>
    %69 = vector.shape_cast %68 : vector<1x64x128xf32> to vector<64x128xf32>
    %70 = arith.addf %67, %69 : vector<64x128xf32>
    %c0_47 = arith.constant 0 : index
    %c0_48 = arith.constant 0 : index
    %c2944 = arith.constant 2944 : index
    %71 = vector.load %arg2[%c0_47, %c0_48, %c2944] : memref<1x64x4096xf32, #tpu.memory_space<vmem>>, vector<1x64x128xf32>
    %72 = vector.shape_cast %71 : vector<1x64x128xf32> to vector<64x128xf32>
    %73 = arith.addf %70, %72 : vector<64x128xf32>
    %c0_49 = arith.constant 0 : index
    %c0_50 = arith.constant 0 : index
    %c3072 = arith.constant 3072 : index
    %74 = vector.load %arg2[%c0_49, %c0_50, %c3072] : memref<1x64x4096xf32, #tpu.memory_space<vmem>>, vector<1x64x128xf32>
    %75 = vector.shape_cast %74 : vector<1x64x128xf32> to vector<64x128xf32>
    %76 = arith.addf %73, %75 : vector<64x128xf32>
    %c0_51 = arith.constant 0 : index
    %c0_52 = arith.constant 0 : index
    %c3200 = arith.constant 3200 : index
    %77 = vector.load %arg2[%c0_51, %c0_52, %c3200] : memref<1x64x4096xf32, #tpu.memory_space<vmem>>, vector<1x64x128xf32>
    %78 = vector.shape_cast %77 : vector<1x64x128xf32> to vector<64x128xf32>
    %79 = arith.addf %76, %78 : vector<64x128xf32>
    %c0_53 = arith.constant 0 : index
    %c0_54 = arith.constant 0 : index
    %c3328 = arith.constant 3328 : index
    %80 = vector.load %arg2[%c0_53, %c0_54, %c3328] : memref<1x64x4096xf32, #tpu.memory_space<vmem>>, vector<1x64x128xf32>
    %81 = vector.shape_cast %80 : vector<1x64x128xf32> to vector<64x128xf32>
    %82 = arith.addf %79, %81 : vector<64x128xf32>
    %c0_55 = arith.constant 0 : index
    %c0_56 = arith.constant 0 : index
    %c3456 = arith.constant 3456 : index
    %83 = vector.load %arg2[%c0_55, %c0_56, %c3456] : memref<1x64x4096xf32, #tpu.memory_space<vmem>>, vector<1x64x128xf32>
    %84 = vector.shape_cast %83 : vector<1x64x128xf32> to vector<64x128xf32>
    %85 = arith.addf %82, %84 : vector<64x128xf32>
    %c0_57 = arith.constant 0 : index
    %c0_58 = arith.constant 0 : index
    %c3584 = arith.constant 3584 : index
    %86 = vector.load %arg2[%c0_57, %c0_58, %c3584] : memref<1x64x4096xf32, #tpu.memory_space<vmem>>, vector<1x64x128xf32>
    %87 = vector.shape_cast %86 : vector<1x64x128xf32> to vector<64x128xf32>
    %88 = arith.addf %85, %87 : vector<64x128xf32>
    %c0_59 = arith.constant 0 : index
    %c0_60 = arith.constant 0 : index
    %c3712 = arith.constant 3712 : index
    %89 = vector.load %arg2[%c0_59, %c0_60, %c3712] : memref<1x64x4096xf32, #tpu.memory_space<vmem>>, vector<1x64x128xf32>
    %90 = vector.shape_cast %89 : vector<1x64x128xf32> to vector<64x128xf32>
    %91 = arith.addf %88, %90 : vector<64x128xf32>
    %c0_61 = arith.constant 0 : index
    %c0_62 = arith.constant 0 : index
    %c3840 = arith.constant 3840 : index
    %92 = vector.load %arg2[%c0_61, %c0_62, %c3840] : memref<1x64x4096xf32, #tpu.memory_space<vmem>>, vector<1x64x128xf32>
    %93 = vector.shape_cast %92 : vector<1x64x128xf32> to vector<64x128xf32>
    %94 = arith.addf %91, %93 : vector<64x128xf32>
    %c0_63 = arith.constant 0 : index
    %c0_64 = arith.constant 0 : index
    %c3968 = arith.constant 3968 : index
    %95 = vector.load %arg2[%c0_63, %c0_64, %c3968] : memref<1x64x4096xf32, #tpu.memory_space<vmem>>, vector<1x64x128xf32>
    %96 = vector.shape_cast %95 : vector<1x64x128xf32> to vector<64x128xf32>
    %97 = arith.addf %94, %96 : vector<64x128xf32>
    %c0_65 = arith.constant 0 : index
    %c0_66 = arith.constant 0 : index
    %98 = vector.load %arg6[%c0_65, %c0_66] : memref<64x128xf32, #tpu.memory_space<vmem>>, vector<64x128xf32>
    %99 = arith.addf %98, %97 : vector<64x128xf32>
    %c0_67 = arith.constant 0 : index
    %c0_68 = arith.constant 0 : index
    %100 = vector.load %arg6[%c0_67, %c0_68] : memref<64x128xf32, #tpu.memory_space<vmem>>, vector<64x128xf32>
    tpu.vector_store %arg6[%c0_67, %c0_68], %99 {strides = array<i32>} : memref<64x128xf32, #tpu.memory_space<vmem>>, vector<64x128xf32>,
    %c0_i32_69 = arith.constant 0 : i32
    %101 = arith.cmpi eq, %arg1, %c0_i32_69 : i32
    %102 = arith.extui %101 : i1 to i32
    %c0_i32_70 = arith.constant 0 : i32
    %103 = arith.cmpi ne, %102, %c0_i32_70 : i32
    scf.if %103 {
      %c0_71 = arith.constant 0 : index
      %c0_72 = arith.constant 0 : index
      %104 = vector.load %arg6[%c0_71, %c0_72] : memref<64x128xf32, #tpu.memory_space<vmem>>, vector<64x128xf32>
      %cst = arith.constant dense<0.000000e+00> : vector<64xf32>
      %105 = vector.multi_reduction <add>, %104, %cst [1] : vector<64x128xf32> to vector<64xf32>
      %106 = vector.shape_cast %105 : vector<64xf32> to vector<64x1xf32>
      %cst_73 = arith.constant 2.44140625E-4 : f32
      %107 = vector.broadcast %cst_73 : f32 to vector<64x1xf32>
      %108 = arith.mulf %106, %107 : vector<64x1xf32>
      %109 = vector.shape_cast %108 : vector<64x1xf32> to vector<1x64x1xf32>
      %cst_74 = arith.constant dense<0.000000e+00> : vector<1xf32>
      %110 = vector.multi_reduction <add>, %109, %cst_74 [1, 2] : vector<1x64x1xf32> to vector<1xf32>
      %111 = vector.shape_cast %110 : vector<1xf32> to vector<1x1x1xf32>
      %112 = vector.extract %111[0, 0, 0] : f32 from vector<1x1x1xf32>
      %cst_75 = arith.constant 6.400000e+01 : f32
      %113 = arith.divf %112, %cst_75 : f32
      %114 = vector.broadcast %113 : f32 to vector<64x1xf32>
      %115 = arith.subf %108, %114 : vector<64x1xf32>
      %c0_76 = arith.constant 0 : index
      %c0_77 = arith.constant 0 : index
      %116 = vector.load %arg3[%c0_76, %c0_77] : memref<64x128xf32, #tpu.memory_space<vmem>>, vector<64x128xf32>
      %117 = vector.broadcast %115 : vector<64x1xf32> to vector<64x128xf32>
      %118 = arith.mulf %116, %117 : vector<64x128xf32>
      %cst_78 = arith.constant dense<0.000000e+00> : vector<128xf32>
      %119 = vector.multi_reduction <add>, %118, %cst_78 [0] : vector<64x128xf32> to vector<128xf32>
      %120 = vector.shape_cast %119 : vector<128xf32> to vector<1x128xf32>
      %121 = arith.mulf %120, %120 : vector<1x128xf32>
      %cst_79 = arith.constant dense<0.000000e+00> : vector<1xf32>
      %122 = vector.multi_reduction <add>, %121, %cst_79 [1] : vector<1x128xf32> to vector<1xf32>
      %123 = vector.shape_cast %122 : vector<1xf32> to vector<1x1xf32>
      %c0_80 = arith.constant 0 : index
      %c0_81 = arith.constant 0 : index
      %124 = vector.load %arg4[%c0_80, %c0_81] : memref<1x128xf32, #tpu.memory_space<vmem>>, vector<1x128xf32>
      %125 = arith.mulf %121, %124 : vector<1x128xf32>
      %cst_82 = arith.constant dense<0.000000e+00> : vector<1xf32>
      %126 = vector.multi_reduction <add>, %125, %cst_82 [1] : vector<1x128xf32> to vector<1xf32>
      %127 = vector.shape_cast %126 : vector<1xf32> to vector<1x1xf32>
      %128 = arith.divf %123, %127 : vector<1x1xf32>
      %cst_83 = arith.constant 1.000000e+00 : f32
      %129 = vector.broadcast %cst_83 : f32 to vector<1x1xf32>
      %130 = arith.subf %128, %129 : vector<1x1xf32>
      %131 = vector.shape_cast %130 : vector<1x1xf32> to vector<1x1x1xf32>
      %132 = vector.shape_cast %131 : vector<1x1x1xf32> to vector<1x1x1xf32>
      %133 = vector.broadcast %132 : vector<1x1x1xf32> to vector<1x1x128xf32>
      %c0_84 = arith.constant 0 : index
      %c0_85 = arith.constant 0 : index
      %c0_86 = arith.constant 0 : index
      %134 = vector.load %arg5[%c0_84, %c0_85, %c0_86] : memref<1x1x128xf32, #tpu.memory_space<vmem>>, vector<1x1x128xf32>
      tpu.vector_store %arg5[%c0_84, %c0_85, %c0_86], %133 {strides = array<i32>} : memref<1x1x128xf32, #tpu.memory_space<vmem>>, vector<1x1x128xf32>,
    } else {
    }
    return
  }
  func.func @transform_0(%arg0: i32, %arg1: i32) -> (i32, i32, i32) {
    %c0_i32 = arith.constant 0 : i32
    %c0_i32_0 = arith.constant 0 : i32
    return %arg0, %c0_i32, %arg1 : i32, i32, i32
  }
  func.func @transform_1(%arg0: i32, %arg1: i32) -> (i32, i32) {
    %c0_i32 = arith.constant 0 : i32
    %c0_i32_0 = arith.constant 0 : i32
    %c0_i32_1 = arith.constant 0 : i32
    return %c0_i32, %c0_i32_0 : i32, i32
  }
  func.func @transform_2(%arg0: i32, %arg1: i32) -> (i32, i32) {
    %c0_i32 = arith.constant 0 : i32
    %c0_i32_0 = arith.constant 0 : i32
    %c0_i32_1 = arith.constant 0 : i32
    return %c0_i32, %c0_i32_0 : i32, i32
  }
  func.func @transform_3(%arg0: i32, %arg1: i32) -> (i32, i32, i32) {
    %c0_i32 = arith.constant 0 : i32
    %c0_i32_0 = arith.constant 0 : i32
    %c0_i32_1 = arith.constant 0 : i32
    return %arg0, %c0_i32, %c0_i32_0 : i32, i32, i32
  }
}

</mosaic_0001>

<llo_original>
// kernel: loss_freq.1
$region0: #{loss_freq.1}
  #allocation0 [shape = 'u32[]', space=smem, size = 0x4, offset = 0x4, fixed_abs, tag = 'smem constant byte address 0x4 - core index']
  #allocation1 [shape = 'u32[144,128]{1,0:T(1,128)}', space=vmem, size = 0x12000, scoped, tag = 'internal scratch']
  #allocation2 [shape = 'f32[64,128]{1,0:T(8,128)}', space=vmem, size = 0x8000, scoped, tag = 'scratch operand']
  %s0 = inlined_call_operand.vmem [shape: f32[2,64,4096], index: 0, kind: input, shape index: {}]
  %s1 = inlined_call_operand.vmem [shape: f32[64,128], index: 1, kind: input, shape index: {}]
  %s2 = inlined_call_operand.vmem [shape: f32[1,128], index: 2, kind: input, shape index: {}]
  %s3 = inlined_call_operand.vmem [shape: f32[2,1,128], index: 3, kind: output, shape index: {}]
  %s4 = sld [smem:[#allocation0]]
  $region53: #{loss_freq.1} parent=0
    _
  %s6 = ssub.s32 1, %s4
  %s7 = scalar_select 0, %s6, %s4
  loop: start=0, step=1, limit=4
  $region2: #{loss_freq.1} parent=0 // loop_pre_header
    _
  $region3: #{loss_freq.1} parent=0 // loop_header
    %s9 = sphi 0, %s13
    %p10 = scmp.ge.s32.totalorder %s9, 4
    %s16 = sphi 0, %s28
    %s17 = sphi 0, %s24
    %s18 = sphi 0, %s16
    %s19 = sphi 0, %s17
    %s20 = sphi 0, %s18
    %s21 = sphi 0, %s19
    %s33 = sphi 0, %s35
    %s36 = sphi 0, %s33
    %s37 = sphi 0, %s36
    %s53 = sphi 0, %s37
    %s57 = sphi 0, %s57
    %s59 = sphi 0, %s57
    %s60 = sphi 0, %s59
    %s74 = sphi 0, %s60
    %s78 = sphi 0, %s78
    %s80 = sphi 0, %s78
    %s81 = sphi 0, %s80
    %s95 = sphi 0, %s81
    %s101 = sphi 0, %s103
    %s104 = sphi 0, %s101
    %s105 = sphi 0, %s104
    %s121 = sphi 0, %s105
  $region4: #{loss_freq.1} parent=0 // loop_header_branch
    %12 = sbr.rel (%p10) target = $region8
  $region5: #{loss_freq.1} parent=0 // loop_body
    %s14 = ssub.s32 %s9, 1
    %s15 = ssub.s32 %s9, 2
    %s22 = sadd.s32 1, %s17
    %p23 = scmp.ge.s32.totalorder %s22, 1
    %s24 = scalar_select %p23, 0, %s22
    %s25 = sadd.s32 1, %s16
    %s26 = scalar_select %p23, %s25, %s16
    %p27 = scmp.ge.s32.totalorder %s26, 2
    %s28 = scalar_select %p27, 0, %s26
    %s29 = ssub.s32 %s16, %s28
    %s30 = ssub.s32 %s17, %s24
    %s31 = sor.u32 %s29, %s30
    %p32 = scmp.eq.s32.totalorder %s31, 0
    %s34 = sadd.s32 %s33, 1
    %s35 = scalar_select %p32, %s33, %s34
    %p38 = pneg %p32
    %p39 = scmp.eq.s32.totalorder %s9, 1
    %p40 = por %p38, %p39
    %p41 = scmp.ne.s32.totalorder %s33, %s36
    %p42 = scmp.eq.s32.totalorder %s9, 0
    %p43 = por %p41, %p42
    %p44 = scmp.ne.s32.totalorder %s33, %s36
    %p45 = scmp.eq.s32.totalorder %s14, 1
    %p46 = por %p44, %p45
    %p47 = scmp.ne.s32.totalorder %s36, %s37
    %p48 = scmp.eq.s32.totalorder %s14, 0
    %p49 = por %p47, %p48
    %p50 = scmp.ne.s32.totalorder %s36, %s37
    %p51 = scmp.eq.s32.totalorder %s15, 1
    %p52 = por %p50, %p51
    %p54 = scmp.ne.s32.totalorder %s37, %s53
    %p55 = scmp.eq.s32.totalorder %s15, 0
    %p56 = por %p54, %p55
    %s58 = sadd.s32 %s57, 1
    %p61 = scmp.eq.s32.totalorder %s9, 1
    %p62 = scmp.ne.s32.totalorder %s57, %s59
    %p63 = scmp.eq.s32.totalorder %s9, 0
    %p64 = por %p62, %p63
    %p65 = scmp.ne.s32.totalorder %s57, %s59
    %p66 = scmp.eq.s32.totalorder %s14, 1
    %p67 = por %p65, %p66
    %p68 = scmp.ne.s32.totalorder %s59, %s60
    %p69 = scmp.eq.s32.totalorder %s14, 0
    %p70 = por %p68, %p69
    %p71 = scmp.ne.s32.totalorder %s59, %s60
    %p72 = scmp.eq.s32.totalorder %s15, 1
    %p73 = por %p71, %p72
    %p75 = scmp.ne.s32.totalorder %s60, %s74
    %p76 = scmp.eq.s32.totalorder %s15, 0
    %p77 = por %p75, %p76
    %s79 = sadd.s32 %s78, 1
    %p82 = scmp.eq.s32.totalorder %s9, 1
    %p83 = scmp.ne.s32.totalorder %s78, %s80
    %p84 = scmp.eq.s32.totalorder %s9, 0
    %p85 = por %p83, %p84
    %p86 = scmp.ne.s32.totalorder %s78, %s80
    %p87 = scmp.eq.s32.totalorder %s14, 1
    %p88 = por %p86, %p87
    %p89 = scmp.ne.s32.totalorder %s80, %s81
    %p90 = scmp.eq.s32.totalorder %s14, 0
    %p91 = por %p89, %p90
    %p92 = scmp.ne.s32.totalorder %s80, %s81
    %p93 = scmp.eq.s32.totalorder %s15, 1
    %p94 = por %p92, %p93
    %p96 = scmp.ne.s32.totalorder %s81, %s95
    %p97 = scmp.eq.s32.totalorder %s15, 0
    %p98 = por %p96, %p97
    %s99 = ssub.s32 %s16, %s28
    %p100 = scmp.eq.s32.totalorder %s99, 0
    %s102 = sadd.s32 %s101, 1
    %s103 = scalar_select %p100, %s101, %s102
    %p106 = pneg %p100
    %p107 = scmp.eq.s32.totalorder %s9, 1
    %p108 = por %p106, %p107
    %p109 = scmp.ne.s32.totalorder %s101, %s104
    %p110 = scmp.eq.s32.totalorder %s9, 0
    %p111 = por %p109, %p110
    %p112 = scmp.ne.s32.totalorder %s101, %s104
    %p113 = scmp.eq.s32.totalorder %s14, 1
    %p114 = por %p112, %p113
    %p115 = scmp.ne.s32.totalorder %s104, %s105
    %p116 = scmp.eq.s32.totalorder %s14, 0
    %p117 = por %p115, %p116
    %p118 = scmp.ne.s32.totalorder %s104, %s105
    %p119 = scmp.eq.s32.totalorder %s15, 1
    %p120 = por %p118, %p119
    %p122 = scmp.ne.s32.totalorder %s105, %s121
    %p123 = scmp.eq.s32.totalorder %s15, 0
    %p124 = por %p122, %p123
    %p125 = scmp.le.s32.totalorder 1, %s9
    %p126 = scmp.lt.s32.totalorder %s9, 3
    %p127 = pnand %p125, %p126
    %p128 = pneg %p127
    // Predicated region
    $region9: #{loss_freq.1} parent=5 // pred_check
      _
    $region10: #{loss_freq.1} parent=5 // pred_check_branch
      %130 = sbr.rel (%p127) target = $region12
    $region11: #{loss_freq.1} parent=5 // pred_region
      %s131 = ssub.s32 %s9, 1
      // Predicated region
      $region13: #{loss_freq.1} parent=11 // pred_check
        %p132 = pneg %p70
      $region14: #{loss_freq.1} parent=11 // pred_check_branch
        %134 = sbr.rel (%p132) target = $region16
      $region15: #{loss_freq.1} parent=11 // pred_region
        _
      $region16: #{loss_freq.1} parent=11 // pred_fallthru
        _
      // Predicated region
      $region17: #{loss_freq.1} parent=11 // pred_check
        %p135 = pneg %p91
      $region18: #{loss_freq.1} parent=11 // pred_check_branch
        %137 = sbr.rel (%p135) target = $region20
      $region19: #{loss_freq.1} parent=11 // pred_region
        _
      $region20: #{loss_freq.1} parent=11 // pred_fallthru
        _
    $region12: #{loss_freq.1} parent=5 // pred_fallthru
      _
    %p138 = scmp.lt.s32.totalorder %s9, 2
    // Predicated region
    $region21: #{loss_freq.1} parent=5 // pred_check
      %p139 = pneg %p138
    $region22: #{loss_freq.1} parent=5 // pred_check_branch
      %141 = sbr.rel (%p139) target = $region24
    $region23: #{loss_freq.1} parent=5 // pred_region
      // Predicated region
      $region25: #{loss_freq.1} parent=23 // pred_check
        %p142 = pneg %p43
      $region26: #{loss_freq.1} parent=23 // pred_check_branch
        %144 = sbr.rel (%p142) target = $region28
      $region27: #{loss_freq.1} parent=23 // pred_region
        %s145 = smul.u32 32, %s17
        %p146 = scmp.lt.s32.totalorder %s16, 1
        %s147 = scalar_select %p146, %s16, 1
        %p148 = scmp.lt.s32.totalorder %s145, 31
        %s149 = scalar_select %p148, %s145, 31
        %s150 = smul.addr %s147, 256
        %s151 = sadd.s32 %s149, %s150
        %s152 = smul.addr %s151, 8
        %s153 = scalar_lea.vmem %s0, %s152
        %s154 = smul.u32 32, %s17
      $region28: #{loss_freq.1} parent=23 // pred_fallthru
        _
    $region24: #{loss_freq.1} parent=5 // pred_fallthru
      _
    %p155 = scmp.le.s32.totalorder 1, %s9
    %p156 = scmp.lt.s32.totalorder %s9, 3
    %p157 = pnand %p155, %p156
    %p158 = pneg %p157
    // Predicated region
    $region29: #{loss_freq.1} parent=5 // pred_check
      _
    $region30: #{loss_freq.1} parent=5 // pred_check_branch
      %160 = sbr.rel (%p157) target = $region32
    $region31: #{loss_freq.1} parent=5 // pred_region
      %s161 = ssub.s32 %s9, 1
      %s162 = smul.u32 32, %s19
      %p163 = scmp.lt.s32.totalorder %s18, 1
      %s164 = scalar_select %p163, %s18, 1
      %p165 = scmp.lt.s32.totalorder %s162, 31
      %s166 = scalar_select %p165, %s162, 31
      %s167 = smul.addr %s164, 256
      %s168 = sadd.s32 %s166, %s167
      %s169 = smul.addr %s168, 8
      %s170 = scalar_lea.vmem %s0, %s169
      %p171 = pneg %p49
      %p172 = pneg %p46
      %p173 = pneg %p70
      %p174 = pneg %p67
      %p175 = pneg %p91
      %p176 = pneg %p88
      %p177 = pneg %p117
      %p178 = pneg %p114
      %p179 = scmp.lt.s32.totalorder %s18, 1
      %s180 = scalar_select %p179, %s18, 1
      %s181 = scalar_lea.vmem %s3, %s180
      %s182 = smul.u32 32, %s19
      %p183 = scmp.lt.s32.totalorder %s18, 1
      %s184 = scalar_select %p183, %s18, 1
      %p185 = scmp.lt.s32.totalorder %s182, 31
      %s186 = scalar_select %p185, %s182, 31
      %s187 = smul.addr %s184, 256
      %s188 = sadd.s32 %s186, %s187
      %s189 = smul.addr %s188, 8
      %s190 = scalar_lea.vmem %s0, %s189
      %s191 = smul.u32 32, %s19
      %p192 = scmp.lt.s32.totalorder %s18, 1
      %s193 = scalar_select %p192, %s18, 1
      %s194 = scalar_lea.vmem %s3, %s193
      %p195 = scmp.eq.s32.totalorder %s19, 0
      // Predicated region
      $region33: #{loss_freq.1} parent=31 // pred_check
        %p196 = pneg %p195
      $region34: #{loss_freq.1} parent=31 // pred_check_branch
        %198 = sbr.rel (%p196) target = $region36
      $region35: #{loss_freq.1} parent=31 // pred_region
        %199 = vst [vmem:[#allocation2] sm:$0xff] 0.0
        %200 = vst [vmem:[#allocation2 + $0x8] sm:$0xff] 0.0
        %201 = vst [vmem:[#allocation2 + $0x10] sm:$0xff] 0.0
        %202 = vst [vmem:[#allocation2 + $0x18] sm:$0xff] 0.0
        %203 = vst [vmem:[#allocation2 + $0x20] sm:$0xff] 0.0
        %204 = vst [vmem:[#allocation2 + $0x28] sm:$0xff] 0.0
        %205 = vst [vmem:[#allocation2 + $0x30] sm:$0xff] 0.0
        %206 = vst [vmem:[#allocation2 + $0x38] sm:$0xff] 0.0
      $region36: #{loss_freq.1} parent=31 // pred_fallthru
        _
      %v207 = vld [vmem:[%s190] sm:$0xff]
      %v208 = vld [vmem:[%s190 + $0x100] sm:$0xff]
      %v209 = vld [vmem:[%s190 + $0x200] sm:$0xff]
      %v210 = vld [vmem:[%s190 + $0x300] sm:$0xff]
      %v211 = vld [vmem:[%s190 + $0x400] sm:$0xff]
      %v212 = vld [vmem:[%s190 + $0x500] sm:$0xff]
      %v213 = vld [vmem:[%s190 + $0x600] sm:$0xff]
      %v214 = vld [vmem:[%s190 + $0x700] sm:$0xff]
      %v215 = vld [vmem:[%s190 + $0x8] sm:$0xff]
      %v216 = vld [vmem:[%s190 + $0x108] sm:$0xff]
      %v217 = vld [vmem:[%s190 + $0x208] sm:$0xff]
      %v218 = vld [vmem:[%s190 + $0x308] sm:$0xff]
      %v219 = vld [vmem:[%s190 + $0x408] sm:$0xff]
      %v220 = vld [vmem:[%s190 + $0x508] sm:$0xff]
      %v221 = vld [vmem:[%s190 + $0x608] sm:$0xff]
      %v222 = vld [vmem:[%s190 + $0x708] sm:$0xff]
      %v223 = vadd.f32 %v207, %v215
      %v224 = vadd.f32 %v208, %v216
      %v225 = vadd.f32 %v209, %v217
      %v226 = vadd.f32 %v210, %v218
      %v227 = vadd.f32 %v211, %v219
      %v228 = vadd.f32 %v212, %v220
      %v229 = vadd.f32 %v213, %v221
      %v230 = vadd.f32 %v214, %v222
      %v231 = vld [vmem:[%s190 + $0x10] sm:$0xff]
      %v232 = vld [vmem:[%s190 + $0x110] sm:$0xff]
      %v233 = vld [vmem:[%s190 + $0x210] sm:$0xff]
      %v234 = vld [vmem:[%s190 + $0x310] sm:$0xff]
      %v235 = vld [vmem:[%s190 + $0x410] sm:$0xff]
      %v236 = vld [vmem:[%s190 + $0x510] sm:$0xff]
      %v237 = vld [vmem:[%s190 + $0x610] sm:$0xff]
      %v238 = vld [vmem:[%s190 + $0x710] sm:$0xff]
      %v239 = vadd.f32 %v223, %v231
      %v240 = vadd.f32 %v224, %v232
      %v241 = vadd.f32 %v225, %v233
      %v242 = vadd.f32 %v226, %v234
      %v243 = vadd.f32 %v227, %v235
      %v244 = vadd.f32 %v228, %v236
      %v245 = vadd.f32 %v229, %v237
      %v246 = vadd.f32 %v230, %v238
      %v247 = vld [vmem:[%s190 + $0x18] sm:$0xff]
      %v248 = vld [vmem:[%s190 + $0x118] sm:$0xff]
      %v249 = vld [vmem:[%s190 + $0x218] sm:$0xff]
      %v250 = vld [vmem:[%s190 + $0x318] sm:$0xff]
      %v251 = vld [vmem:[%s190 + $0x418] sm:$0xff]
      %v252 = vld [vmem:[%s190 + $0x518] sm:$0xff]
      %v253 = vld [vmem:[%s190 + $0x618] sm:$0xff]
      %v254 = vld [vmem:[%s190 + $0x718] sm:$0xff]
      %v255 = vadd.f32 %v239, %v247
      %v256 = vadd.f32 %v240, %v248
      %v257 = vadd.f32 %v241, %v249
      %v258 = vadd.f32 %v242, %v250
      %v259 = vadd.f32 %v243, %v251
      %v260 = vadd.f32 %v244, %v252
      %v261 = vadd.f32 %v245, %v253
      %v262 = vadd.f32 %v246, %v254
      %v263 = vld [vmem:[%s190 + $0x20] sm:$0xff]
      %v264 = vld [vmem:[%s190 + $0x120] sm:$0xff]
      %v265 = vld [vmem:[%s190 + $0x220] sm:$0xff]
      %v266 = vld [vmem:[%s190 + $0x320] sm:$0xff]
      %v267 = vld [vmem:[%s190 + $0x420] sm:$0xff]
      %v268 = vld [vmem:[%s190 + $0x520] sm:$0xff]
      %v269 = vld [vmem:[%s190 + $0x620] sm:$0xff]
      %v270 = vld [vmem:[%s190 + $0x720] sm:$0xff]
      %v271 = vadd.f32 %v255, %v263
      %v272 = vadd.f32 %v256, %v264
      %v273 = vadd.f32 %v257, %v265
      %v274 = vadd.f32 %v258, %v266
      %v275 = vadd.f32 %v259, %v267
      %v276 = vadd.f32 %v260, %v268
      %v277 = vadd.f32 %v261, %v269
      %v278 = vadd.f32 %v262, %v270
      %v279 = vld [vmem:[%s190 + $0x28] sm:$0xff]
      %v280 = vld [vmem:[%s190 + $0x128] sm:$0xff]
      %v281 = vld [vmem:[%s190 + $0x228] sm:$0xff]
      %v282 = vld [vmem:[%s190 + $0x328] sm:$0xff]
      %v283 = vld [vmem:[%s190 + $0x428] sm:$0xff]
      %v284 = vld [vmem:[%s190 + $0x528] sm:$0xff]
      %v285 = vld [vmem:[%s190 + $0x628] sm:$0xff]
      %v286 = vld [vmem:[%s190 + $0x728] sm:$0xff]
      %v287 = vadd.f32 %v271, %v279
      %v288 = vadd.f32 %v272, %v280
      %v289 = vadd.f32 %v273, %v281
      %v290 = vadd.f32 %v274, %v282
      %v291 = vadd.f32 %v275, %v283
      %v292 = vadd.f32 %v276, %v284
      %v293 = vadd.f32 %v277, %v285
      %v294 = vadd.f32 %v278, %v286
      %v295 = vld [vmem:[%s190 + $0x30] sm:$0xff]
      %v296 = vld [vmem:[%s190 + $0x130] sm:$0xff]
      %v297 = vld [vmem:[%s190 + $0x230] sm:$0xff]
      %v298 = vld [vmem:[%s190 + $0x330] sm:$0xff]
      %v299 = vld [vmem:[%s190 + $0x430] sm:$0xff]
      %v300 = vld [vmem:[%s190 + $0x530] sm:$0xff]
      %v301 = vld [vmem:[%s190 + $0x630] sm:$0xff]
      %v302 = vld [vmem:[%s190 + $0x730] sm:$0xff]
      %v303 = vadd.f32 %v287, %v295
      %v304 = vadd.f32 %v288, %v296
      %v305 = vadd.f32 %v289, %v297
      %v306 = vadd.f32 %v290, %v298
      %v307 = vadd.f32 %v291, %v299
      %v308 = vadd.f32 %v292, %v300
      %v309 = vadd.f32 %v293, %v301
      %v310 = vadd.f32 %v294, %v302
      %v311 = vld [vmem:[%s190 + $0x38] sm:$0xff]
      %v312 = vld [vmem:[%s190 + $0x138] sm:$0xff]
      %v313 = vld [vmem:[%s190 + $0x238] sm:$0xff]
      %v314 = vld [vmem:[%s190 + $0x338] sm:$0xff]
      %v315 = vld [vmem:[%s190 + $0x438] sm:$0xff]
      %v316 = vld [vmem:[%s190 + $0x538] sm:$0xff]
      %v317 = vld [vmem:[%s190 + $0x638] sm:$0xff]
      %v318 = vld [vmem:[%s190 + $0x738] sm:$0xff]
      %v319 = vadd.f32 %v303, %v311
      %v320 = vadd.f32 %v304, %v312
      %v321 = vadd.f32 %v305, %v313
      %v322 = vadd.f32 %v306, %v314
      %v323 = vadd.f32 %v307, %v315
      %v324 = vadd.f32 %v308, %v316
      %v325 = vadd.f32 %v309, %v317
      %v326 = vadd.f32 %v310, %v318
      %v327 = vld [vmem:[%s190 + $0x40] sm:$0xff]
      %v328 = vld [vmem:[%s190 + $0x140] sm:$0xff]
      %v329 = vld [vmem:[%s190 + $0x240] sm:$0xff]
      %v330 = vld [vmem:[%s190 + $0x340] sm:$0xff]
      %v331 = vld [vmem:[%s190 + $0x440] sm:$0xff]
      %v332 = vld [vmem:[%s190 + $0x540] sm:$0xff]
      %v333 = vld [vmem:[%s190 + $0x640] sm:$0xff]
      %v334 = vld [vmem:[%s190 + $0x740] sm:$0xff]
      %v335 = vadd.f32 %v319, %v327
      %v336 = vadd.f32 %v320, %v328
      %v337 = vadd.f32 %v321, %v329
      %v338 = vadd.f32 %v322, %v330
      %v339 = vadd.f32 %v323, %v331
      %v340 = vadd.f32 %v324, %v332
      %v341 = vadd.f32 %v325, %v333
      %v342 = vadd.f32 %v326, %v334
      %v343 = vld [vmem:[%s190 + $0x48] sm:$0xff]
      %v344 = vld [vmem:[%s190 + $0x148] sm:$0xff]
      %v345 = vld [vmem:[%s190 + $0x248] sm:$0xff]
      %v346 = vld [vmem:[%s190 + $0x348] sm:$0xff]
      %v347 = vld [vmem:[%s190 + $0x448] sm:$0xff]
      %v348 = vld [vmem:[%s190 + $0x548] sm:$0xff]
      %v349 = vld [vmem:[%s190 + $0x648] sm:$0xff]
      %v350 = vld [vmem:[%s190 + $0x748] sm:$0xff]
      %v351 = vadd.f32 %v335, %v343
      %v352 = vadd.f32 %v336, %v344
      %v353 = vadd.f32 %v337, %v345
      %v354 = vadd.f32 %v338, %v346
      %v355 = vadd.f32 %v339, %v347
      %v356 = vadd.f32 %v340, %v348
      %v357 = vadd.f32 %v341, %v349
      %v358 = vadd.f32 %v342, %v350
      %v359 = vld [vmem:[%s190 + $0x50] sm:$0xff]
      %v360 = vld [vmem:[%s190 + $0x150] sm:$0xff]
      %v361 = vld [vmem:[%s190 + $0x250] sm:$0xff]
      %v362 = vld [vmem:[%s190 + $0x350] sm:$0xff]
      %v363 = vld [vmem:[%s190 + $0x450] sm:$0xff]
      %v364 = vld [vmem:[%s190 + $0x550] sm:$0xff]
      %v365 = vld [vmem:[%s190 + $0x650] sm:$0xff]
      %v366 = vld [vmem:[%s190 + $0x750] sm:$0xff]
      %v367 = vadd.f32 %v351, %v359
      %v368 = vadd.f32 %v352, %v360
      %v369 = vadd.f32 %v353, %v361
      %v370 = vadd.f32 %v354, %v362
      %v371 = vadd.f32 %v355, %v363
      %v372 = vadd.f32 %v356, %v364
      %v373 = vadd.f32 %v357, %v365
      %v374 = vadd.f32 %v358, %v366
      %v375 = vld [vmem:[%s190 + $0x58] sm:$0xff]
      %v376 = vld [vmem:[%s190 + $0x158] sm:$0xff]
      %v377 = vld [vmem:[%s190 + $0x258] sm:$0xff]
      %v378 = vld [vmem:[%s190 + $0x358] sm:$0xff]
      %v379 = vld [vmem:[%s190 + $0x458] sm:$0xff]
      %v380 = vld [vmem:[%s190 + $0x558] sm:$0xff]
      %v381 = vld [vmem:[%s190 + $0x658] sm:$0xff]
      %v382 = vld [vmem:[%s190 + $0x758] sm:$0xff]
      %v383 = vadd.f32 %v367, %v375
      %v384 = vadd.f32 %v368, %v376
      %v385 = vadd.f32 %v369, %v377
      %v386 = vadd.f32 %v370, %v378
      %v387 = vadd.f32 %v371, %v379
      %v388 = vadd.f32 %v372, %v380
      %v389 = vadd.f32 %v373, %v381
      %v390 = vadd.f32 %v374, %v382
      %v391 = vld [vmem:[%s190 + $0x60] sm:$0xff]
      %v392 = vld [vmem:[%s190 + $0x160] sm:$0xff]
      %v393 = vld [vmem:[%s190 + $0x260] sm:$0xff]
      %v394 = vld [vmem:[%s190 + $0x360] sm:$0xff]
      %v395 = vld [vmem:[%s190 + $0x460] sm:$0xff]
      %v396 = vld [vmem:[%s190 + $0x560] sm:$0xff]
      %v397 = vld [vmem:[%s190 + $0x660] sm:$0xff]
      %v398 = vld [vmem:[%s190 + $0x760] sm:$0xff]
      %v399 = vadd.f32 %v383, %v391
      %v400 = vadd.f32 %v384, %v392
      %v401 = vadd.f32 %v385, %v393
      %v402 = vadd.f32 %v386, %v394
      %v403 = vadd.f32 %v387, %v395
      %v404 = vadd.f32 %v388, %v396
      %v405 = vadd.f32 %v389, %v397
      %v406 = vadd.f32 %v390, %v398
      %v407 = vld [vmem:[%s190 + $0x68] sm:$0xff]
      %v408 = vld [vmem:[%s190 + $0x168] sm:$0xff]
      %v409 = vld [vmem:[%s190 + $0x268] sm:$0xff]
      %v410 = vld [vmem:[%s190 + $0x368] sm:$0xff]
      %v411 = vld [vmem:[%s190 + $0x468] sm:$0xff]
      %v412 = vld [vmem:[%s190 + $0x568] sm:$0xff]
      %v413 = vld [vmem:[%s190 + $0x668] sm:$0xff]
      %v414 = vld [vmem:[%s190 + $0x768] sm:$0xff]
      %v415 = vadd.f32 %v399, %v407
      %v416 = vadd.f32 %v400, %v408
      %v417 = vadd.f32 %v401, %v409
      %v418 = vadd.f32 %v402, %v410
      %v419 = vadd.f32 %v403, %v411
      %v420 = vadd.f32 %v404, %v412
      %v421 = vadd.f32 %v405, %v413
      %v422 = vadd.f32 %v406, %v414
      %v423 = vld [vmem:[%s190 + $0x70] sm:$0xff]
      %v424 = vld [vmem:[%s190 + $0x170] sm:$0xff]
      %v425 = vld [vmem:[%s190 + $0x270] sm:$0xff]
      %v426 = vld [vmem:[%s190 + $0x370] sm:$0xff]
      %v427 = vld [vmem:[%s190 + $0x470] sm:$0xff]
      %v428 = vld [vmem:[%s190 + $0x570] sm:$0xff]
      %v429 = vld [vmem:[%s190 + $0x670] sm:$0xff]
      %v430 = vld [vmem:[%s190 + $0x770] sm:$0xff]
      %v431 = vadd.f32 %v415, %v423
      %v432 = vadd.f32 %v416, %v424
      %v433 = vadd.f32 %v417, %v425
      %v434 = vadd.f32 %v418, %v426
      %v435 = vadd.f32 %v419, %v427
      %v436 = vadd.f32 %v420, %v428
      %v437 = vadd.f32 %v421, %v429
      %v438 = vadd.f32 %v422, %v430
      %v439 = vld [vmem:[%s190 + $0x78] sm:$0xff]
      %v440 = vld [vmem:[%s190 + $0x178] sm:$0xff]
      %v441 = vld [vmem:[%s190 + $0x278] sm:$0xff]
      %v442 = vld [vmem:[%s190 + $0x378] sm:$0xff]
      %v443 = vld [vmem:[%s190 + $0x478] sm:$0xff]
      %v444 = vld [vmem:[%s190 + $0x578] sm:$0xff]
      %v445 = vld [vmem:[%s190 + $0x678] sm:$0xff]
      %v446 = vld [vmem:[%s190 + $0x778] sm:$0xff]
      %v447 = vadd.f32 %v431, %v439
      %v448 = vadd.f32 %v432, %v440
      %v449 = vadd.f32 %v433, %v441
      %v450 = vadd.f32 %v434, %v442
      %v451 = vadd.f32 %v435, %v443
      %v452 = vadd.f32 %v436, %v444
      %v453 = vadd.f32 %v437, %v445
      %v454 = vadd.f32 %v438, %v446
      %v455 = vld [vmem:[%s190 + $0x80] sm:$0xff]
      %v456 = vld [vmem:[%s190 + $0x180] sm:$0xff]
      %v457 = vld [vmem:[%s190 + $0x280] sm:$0xff]
      %v458 = vld [vmem:[%s190 + $0x380] sm:$0xff]
      %v459 = vld [vmem:[%s190 + $0x480] sm:$0xff]
      %v460 = vld [vmem:[%s190 + $0x580] sm:$0xff]
      %v461 = vld [vmem:[%s190 + $0x680] sm:$0xff]
      %v462 = vld [vmem:[%s190 + $0x780] sm:$0xff]
      %v463 = vadd.f32 %v447, %v455
      %v464 = vadd.f32 %v448, %v456
      %v465 = vadd.f32 %v449, %v457
      %v466 = vadd.f32 %v450, %v458
      %v467 = vadd.f32 %v451, %v459
      %v468 = vadd.f32 %v452, %v460
      %v469 = vadd.f32 %v453, %v461
      %v470 = vadd.f32 %v454, %v462
      %v471 = vld [vmem:[%s190 + $0x88] sm:$0xff]
      %v472 = vld [vmem:[%s190 + $0x188] sm:$0xff]
      %v473 = vld [vmem:[%s190 + $0x288] sm:$0xff]
      %v474 = vld [vmem:[%s190 + $0x388] sm:$0xff]
      %v475 = vld [vmem:[%s190 + $0x488] sm:$0xff]
      %v476 = vld [vmem:[%s190 + $0x588] sm:$0xff]
      %v477 = vld [vmem:[%s190 + $0x688] sm:$0xff]
      %v478 = vld [vmem:[%s190 + $0x788] sm:$0xff]
      %v479 = vadd.f32 %v463, %v471
      %v480 = vadd.f32 %v464, %v472
      %v481 = vadd.f32 %v465, %v473
      %v482 = vadd.f32 %v466, %v474
      %v483 = vadd.f32 %v467, %v475
      %v484 = vadd.f32 %v468, %v476
      %v485 = vadd.f32 %v469, %v477
      %v486 = vadd.f32 %v470, %v478
      %v487 = vld [vmem:[%s190 + $0x90] sm:$0xff]
      %v488 = vld [vmem:[%s190 + $0x190] sm:$0xff]
      %v489 = vld [vmem:[%s190 + $0x290] sm:$0xff]
      %v490 = vld [vmem:[%s190 + $0x390] sm:$0xff]
      %v491 = vld [vmem:[%s190 + $0x490] sm:$0xff]
      %v492 = vld [vmem:[%s190 + $0x590] sm:$0xff]
      %v493 = vld [vmem:[%s190 + $0x690] sm:$0xff]
      %v494 = vld [vmem:[%s190 + $0x790] sm:$0xff]
      %v495 = vadd.f32 %v479, %v487
      %v496 = vadd.f32 %v480, %v488
      %v497 = vadd.f32 %v481, %v489
      %v498 = vadd.f32 %v482, %v490
      %v499 = vadd.f32 %v483, %v491
      %v500 = vadd.f32 %v484, %v492
      %v501 = vadd.f32 %v485, %v493
      %v502 = vadd.f32 %v486, %v494
      %v503 = vld [vmem:[%s190 + $0x98] sm:$0xff]
      %v504 = vld [vmem:[%s190 + $0x198] sm:$0xff]
      %v505 = vld [vmem:[%s190 + $0x298] sm:$0xff]
      %v506 = vld [vmem:[%s190 + $0x398] sm:$0xff]
      %v507 = vld [vmem:[%s190 + $0x498] sm:$0xff]
      %v508 = vld [vmem:[%s190 + $0x598] sm:$0xff]
      %v509 = vld [vmem:[%s190 + $0x698] sm:$0xff]
      %v510 = vld [vmem:[%s190 + $0x798] sm:$0xff]
      %v511 = vadd.f32 %v495, %v503
      %v512 = vadd.f32 %v496, %v504
      %v513 = vadd.f32 %v497, %v505
      %v514 = vadd.f32 %v498, %v506
      %v515 = vadd.f32 %v499, %v507
      %v516 = vadd.f32 %v500, %v508
      %v517 = vadd.f32 %v501, %v509
      %v518 = vadd.f32 %v502, %v510
      %v519 = vld [vmem:[%s190 + $0xa0] sm:$0xff]
      %v520 = vld [vmem:[%s190 + $0x1a0] sm:$0xff]
      %v521 = vld [vmem:[%s190 + $0x2a0] sm:$0xff]
      %v522 = vld [vmem:[%s190 + $0x3a0] sm:$0xff]
      %v523 = vld [vmem:[%s190 + $0x4a0] sm:$0xff]
      %v524 = vld [vmem:[%s190 + $0x5a0] sm:$0xff]
      %v525 = vld [vmem:[%s190 + $0x6a0] sm:$0xff]
      %v526 = vld [vmem:[%s190 + $0x7a0] sm:$0xff]
      %v527 = vadd.f32 %v511, %v519
      %v528 = vadd.f32 %v512, %v520
      %v529 = vadd.f32 %v513, %v521
      %v530 = vadd.f32 %v514, %v522
      %v531 = vadd.f32 %v515, %v523
      %v532 = vadd.f32 %v516, %v524
      %v533 = vadd.f32 %v517, %v525
      %v534 = vadd.f32 %v518, %v526
      %v535 = vld [vmem:[%s190 + $0xa8] sm:$0xff]
      %v536 = vld [vmem:[%s190 + $0x1a8] sm:$0xff]
      %v537 = vld [vmem:[%s190 + $0x2a8] sm:$0xff]
      %v538 = vld [vmem:[%s190 + $0x3a8] sm:$0xff]
      %v539 = vld [vmem:[%s190 + $0x4a8] sm:$0xff]
      %v540 = vld [vmem:[%s190 + $0x5a8] sm:$0xff]
      %v541 = vld [vmem:[%s190 + $0x6a8] sm:$0xff]
      %v542 = vld [vmem:[%s190 + $0x7a8] sm:$0xff]
      %v543 = vadd.f32 %v527, %v535
      %v544 = vadd.f32 %v528, %v536
      %v545 = vadd.f32 %v529, %v537
      %v546 = vadd.f32 %v530, %v538
      %v547 = vadd.f32 %v531, %v539
      %v548 = vadd.f32 %v532, %v540
      %v549 = vadd.f32 %v533, %v541
      %v550 = vadd.f32 %v534, %v542
      %v551 = vld [vmem:[%s190 + $0xb0] sm:$0xff]
      %v552 = vld [vmem:[%s190 + $0x1b0] sm:$0xff]
      %v553 = vld [vmem:[%s190 + $0x2b0] sm:$0xff]
      %v554 = vld [vmem:[%s190 + $0x3b0] sm:$0xff]
      %v555 = vld [vmem:[%s190 + $0x4b0] sm:$0xff]
      %v556 = vld [vmem:[%s190 + $0x5b0] sm:$0xff]
      %v557 = vld [vmem:[%s190 + $0x6b0] sm:$0xff]
      %v558 = vld [vmem:[%s190 + $0x7b0] sm:$0xff]
      %v559 = vadd.f32 %v543, %v551
      %v560 = vadd.f32 %v544, %v552
      %v561 = vadd.f32 %v545, %v553
      %v562 = vadd.f32 %v546, %v554
      %v563 = vadd.f32 %v547, %v555
      %v564 = vadd.f32 %v548, %v556
      %v565 = vadd.f32 %v549, %v557
      %v566 = vadd.f32 %v550, %v558
      %v567 = vld [vmem:[%s190 + $0xb8] sm:$0xff]
      %v568 = vld [vmem:[%s190 + $0x1b8] sm:$0xff]
      %v569 = vld [vmem:[%s190 + $0x2b8] sm:$0xff]
      %v570 = vld [vmem:[%s190 + $0x3b8] sm:$0xff]
      %v571 = vld [vmem:[%s190 + $0x4b8] sm:$0xff]
      %v572 = vld [vmem:[%s190 + $0x5b8] sm:$0xff]
      %v573 = vld [vmem:[%s190 + $0x6b8] sm:$0xff]
      %v574 = vld [vmem:[%s190 + $0x7b8] sm:$0xff]
      %v575 = vadd.f32 %v559, %v567
      %v576 = vadd.f32 %v560, %v568
      %v577 = vadd.f32 %v561, %v569
      %v578 = vadd.f32 %v562, %v570
      %v579 = vadd.f32 %v563, %v571
      %v580 = vadd.f32 %v564, %v572
      %v581 = vadd.f32 %v565, %v573
      %v582 = vadd.f32 %v566, %v574
      %v583 = vld [vmem:[%s190 + $0xc0] sm:$0xff]
      %v584 = vld [vmem:[%s190 + $0x1c0] sm:$0xff]
      %v585 = vld [vmem:[%s190 + $0x2c0] sm:$0xff]
      %v586 = vld [vmem:[%s190 + $0x3c0] sm:$0xff]
      %v587 = vld [vmem:[%s190 + $0x4c0] sm:$0xff]
      %v588 = vld [vmem:[%s190 + $0x5c0] sm:$0xff]
      %v589 = vld [vmem:[%s190 + $0x6c0] sm:$0xff]
      %v590 = vld [vmem:[%s190 + $0x7c0] sm:$0xff]
      %v591 = vadd.f32 %v575, %v583
      %v592 = vadd.f32 %v576, %v584
      %v593 = vadd.f32 %v577, %v585
      %v594 = vadd.f32 %v578, %v586
      %v595 = vadd.f32 %v579, %v587
      %v596 = vadd.f32 %v580, %v588
      %v597 = vadd.f32 %v581, %v589
      %v598 = vadd.f32 %v582, %v590
      %v599 = vld [vmem:[%s190 + $0xc8] sm:$0xff]
      %v600 = vld [vmem:[%s190 + $0x1c8] sm:$0xff]
      %v601 = vld [vmem:[%s190 + $0x2c8] sm:$0xff]
      %v602 = vld [vmem:[%s190 + $0x3c8] sm:$0xff]
      %v603 = vld [vmem:[%s190 + $0x4c8] sm:$0xff]
      %v604 = vld [vmem:[%s190 + $0x5c8] sm:$0xff]
      %v605 = vld [vmem:[%s190 + $0x6c8] sm:$0xff]
      %v606 = vld [vmem:[%s190 + $0x7c8] sm:$0xff]
      %v607 = vadd.f32 %v591, %v599
      %v608 = vadd.f32 %v592, %v600
      %v609 = vadd.f32 %v593, %v601
      %v610 = vadd.f32 %v594, %v602
      %v611 = vadd.f32 %v595, %v603
      %v612 = vadd.f32 %v596, %v604
      %v613 = vadd.f32 %v597, %v605
      %v614 = vadd.f32 %v598, %v606
      %v615 = vld [vmem:[%s190 + $0xd0] sm:$0xff]
      %v616 = vld [vmem:[%s190 + $0x1d0] sm:$0xff]
      %v617 = vld [vmem:[%s190 + $0x2d0] sm:$0xff]
      %v618 = vld [vmem:[%s190 + $0x3d0] sm:$0xff]
      %v619 = vld [vmem:[%s190 + $0x4d0] sm:$0xff]
      %v620 = vld [vmem:[%s190 + $0x5d0] sm:$0xff]
      %v621 = vld [vmem:[%s190 + $0x6d0] sm:$0xff]
      %v622 = vld [vmem:[%s190 + $0x7d0] sm:$0xff]
      %v623 = vadd.f32 %v607, %v615
      %v624 = vadd.f32 %v608, %v616
      %v625 = vadd.f32 %v609, %v617
      %v626 = vadd.f32 %v610, %v618
      %v627 = vadd.f32 %v611, %v619
      %v628 = vadd.f32 %v612, %v620
      %v629 = vadd.f32 %v613, %v621
      %v630 = vadd.f32 %v614, %v622
      %v631 = vld [vmem:[%s190 + $0xd8] sm:$0xff]
      %v632 = vld [vmem:[%s190 + $0x1d8] sm:$0xff]
      %v633 = vld [vmem:[%s190 + $0x2d8] sm:$0xff]
      %v634 = vld [vmem:[%s190 + $0x3d8] sm:$0xff]
      %v635 = vld [vmem:[%s190 + $0x4d8] sm:$0xff]
      %v636 = vld [vmem:[%s190 + $0x5d8] sm:$0xff]
      %v637 = vld [vmem:[%s190 + $0x6d8] sm:$0xff]
      %v638 = vld [vmem:[%s190 + $0x7d8] sm:$0xff]
      %v639 = vadd.f32 %v623, %v631
      %v640 = vadd.f32 %v624, %v632
      %v641 = vadd.f32 %v625, %v633
      %v642 = vadd.f32 %v626, %v634
      %v643 = vadd.f32 %v627, %v635
      %v644 = vadd.f32 %v628, %v636
      %v645 = vadd.f32 %v629, %v637
      %v646 = vadd.f32 %v630, %v638
      %v647 = vld [vmem:[%s190 + $0xe0] sm:$0xff]
      %v648 = vld [vmem:[%s190 + $0x1e0] sm:$0xff]
      %v649 = vld [vmem:[%s190 + $0x2e0] sm:$0xff]
      %v650 = vld [vmem:[%s190 + $0x3e0] sm:$0xff]
      %v651 = vld [vmem:[%s190 + $0x4e0] sm:$0xff]
      %v652 = vld [vmem:[%s190 + $0x5e0] sm:$0xff]
      %v653 = vld [vmem:[%s190 + $0x6e0] sm:$0xff]
      %v654 = vld [vmem:[%s190 + $0x7e0] sm:$0xff]
      %v655 = vadd.f32 %v639, %v647
      %v656 = vadd.f32 %v640, %v648
      %v657 = vadd.f32 %v641, %v649
      %v658 = vadd.f32 %v642, %v650
      %v659 = vadd.f32 %v643, %v651
      %v660 = vadd.f32 %v644, %v652
      %v661 = vadd.f32 %v645, %v653
      %v662 = vadd.f32 %v646, %v654
      %v663 = vld [vmem:[%s190 + $0xe8] sm:$0xff]
      %v664 = vld [vmem:[%s190 + $0x1e8] sm:$0xff]
      %v665 = vld [vmem:[%s190 + $0x2e8] sm:$0xff]
      %v666 = vld [vmem:[%s190 + $0x3e8] sm:$0xff]
      %v667 = vld [vmem:[%s190 + $0x4e8] sm:$0xff]
      %v668 = vld [vmem:[%s190 + $0x5e8] sm:$0xff]
      %v669 = vld [vmem:[%s190 + $0x6e8] sm:$0xff]
      %v670 = vld [vmem:[%s190 + $0x7e8] sm:$0xff]
      %v671 = vadd.f32 %v655, %v663
      %v672 = vadd.f32 %v656, %v664
      %v673 = vadd.f32 %v657, %v665
      %v674 = vadd.f32 %v658, %v666
      %v675 = vadd.f32 %v659, %v667
      %v676 = vadd.f32 %v660, %v668
      %v677 = vadd.f32 %v661, %v669
      %v678 = vadd.f32 %v662, %v670
      %v679 = vld [vmem:[%s190 + $0xf0] sm:$0xff]
      %v680 = vld [vmem:[%s190 + $0x1f0] sm:$0xff]
      %v681 = vld [vmem:[%s190 + $0x2f0] sm:$0xff]
      %v682 = vld [vmem:[%s190 + $0x3f0] sm:$0xff]
      %v683 = vld [vmem:[%s190 + $0x4f0] sm:$0xff]
      %v684 = vld [vmem:[%s190 + $0x5f0] sm:$0xff]
      %v685 = vld [vmem:[%s190 + $0x6f0] sm:$0xff]
      %v686 = vld [vmem:[%s190 + $0x7f0] sm:$0xff]
      %v687 = vadd.f32 %v671, %v679
      %v688 = vadd.f32 %v672, %v680
      %v689 = vadd.f32 %v673, %v681
      %v690 = vadd.f32 %v674, %v682
      %v691 = vadd.f32 %v675, %v683
      %v692 = vadd.f32 %v676, %v684
      %v693 = vadd.f32 %v677, %v685
      %v694 = vadd.f32 %v678, %v686
      %v695 = vld [vmem:[%s190 + $0xf8] sm:$0xff]
      %v696 = vld [vmem:[%s190 + $0x1f8] sm:$0xff]
      %v697 = vld [vmem:[%s190 + $0x2f8] sm:$0xff]
      %v698 = vld [vmem:[%s190 + $0x3f8] sm:$0xff]
      %v699 = vld [vmem:[%s190 + $0x4f8] sm:$0xff]
      %v700 = vld [vmem:[%s190 + $0x5f8] sm:$0xff]
      %v701 = vld [vmem:[%s190 + $0x6f8] sm:$0xff]
      %v702 = vld [vmem:[%s190 + $0x7f8] sm:$0xff]
      %v703 = vadd.f32 %v687, %v695
      %v704 = vadd.f32 %v688, %v696
      %v705 = vadd.f32 %v689, %v697
      %v706 = vadd.f32 %v690, %v698
      %v707 = vadd.f32 %v691, %v699
      %v708 = vadd.f32 %v692, %v700
      %v709 = vadd.f32 %v693, %v701
      %v710 = vadd.f32 %v694, %v702
      %v711 = vld [vmem:[#allocation2] sm:$0xff]
      %v712 = vld [vmem:[#allocation2 + $0x8] sm:$0xff]
      %v713 = vld [vmem:[#allocation2 + $0x10] sm:$0xff]
      %v714 = vld [vmem:[#allocation2 + $0x18] sm:$0xff]
      %v715 = vld [vmem:[#allocation2 + $0x20] sm:$0xff]
      %v716 = vld [vmem:[#allocation2 + $0x28] sm:$0xff]
      %v717 = vld [vmem:[#allocation2 + $0x30] sm:$0xff]
      %v718 = vld [vmem:[#allocation2 + $0x38] sm:$0xff]
      %v719 = vadd.f32 %v711, %v703
      %v720 = vadd.f32 %v712, %v704
      %v721 = vadd.f32 %v713, %v705
      %v722 = vadd.f32 %v714, %v706
      %v723 = vadd.f32 %v715, %v707
      %v724 = vadd.f32 %v716, %v708
      %v725 = vadd.f32 %v717, %v709
      %v726 = vadd.f32 %v718, %v710
      %727 = vst [vmem:[#allocation2] sm:$0xff] %v719
      %728 = vst [vmem:[#allocation2 + $0x8] sm:$0xff] %v720
      %729 = vst [vmem:[#allocation2 + $0x10] sm:$0xff] %v721
      %730 = vst [vmem:[#allocation2 + $0x18] sm:$0xff] %v722
      %731 = vst [vmem:[#allocation2 + $0x20] sm:$0xff] %v723
      %732 = vst [vmem:[#allocation2 + $0x28] sm:$0xff] %v724
      %733 = vst [vmem:[#allocation2 + $0x30] sm:$0xff] %v725
      %734 = vst [vmem:[#allocation2 + $0x38] sm:$0xff] %v726
      // Predicated region
      $region37: #{loss_freq.1} parent=31 // pred_check
        %p735 = pneg %p195
      $region38: #{loss_freq.1} parent=31 // pred_check_branch
        %737 = sbr.rel (%p735) target = $region40
      $region39: #{loss_freq.1} parent=31 // pred_region
        %v738 = vld [vmem:[#allocation2] sm:$0xff]
        %v739 = vld [vmem:[#allocation2 + $0x8] sm:$0xff]
        %v740 = vld [vmem:[#allocation2 + $0x10] sm:$0xff]
        %v741 = vld [vmem:[#allocation2 + $0x18] sm:$0xff]
        %v742 = vld [vmem:[#allocation2 + $0x20] sm:$0xff]
        %v743 = vld [vmem:[#allocation2 + $0x28] sm:$0xff]
        %v744 = vld [vmem:[#allocation2 + $0x30] sm:$0xff]
        %v745 = vld [vmem:[#allocation2 + $0x38] sm:$0xff]
        %746 = vadd.xlane.f32.xlu0 %v738
        %v747 = vpop.xlane.xlu0 %746
        %748 = vadd.xlane.f32.xlu0 %v739
        %v749 = vpop.xlane.xlu0 %748
        %750 = vadd.xlane.f32.xlu0 %v740
        %v751 = vpop.xlane.xlu0 %750
        %752 = vadd.xlane.f32.xlu0 %v741
        %v753 = vpop.xlane.xlu0 %752
        %754 = vadd.xlane.f32.xlu0 %v742
        %v755 = vpop.xlane.xlu0 %754
        %756 = vadd.xlane.f32.xlu0 %v743
        %v757 = vpop.xlane.xlu0 %756
        %758 = vadd.xlane.f32.xlu0 %v744
        %v759 = vpop.xlane.xlu0 %758
        %760 = vadd.xlane.f32.xlu0 %v745
        %v761 = vpop.xlane.xlu0 %760
        %v762 = vmul.f32 %v747, 0.00024414063
        %v763 = vmul.f32 %v749, 0.00024414063
        %v764 = vmul.f32 %v751, 0.00024414063
        %v765 = vmul.f32 %v753, 0.00024414063
        %v766 = vmul.f32 %v755, 0.00024414063
        %v767 = vmul.f32 %v757, 0.00024414063
        %v768 = vmul.f32 %v759, 0.00024414063
        %v769 = vmul.f32 %v761, 0.00024414063
        %vm770 = vcmask 7168
        %v771 = vsel %vm770, %v762, 0.0
        %v772 = vsel %vm770, %v763, 0.0
        %v773 = vadd.f32 %v771, %v772
        %v774 = vsel %vm770, %v764, 0.0
        %v775 = vadd.f32 %v773, %v774
        %v776 = vsel %vm770, %v765, 0.0
        %v777 = vadd.f32 %v775, %v776
        %v778 = vsel %vm770, %v766, 0.0
        %v779 = vadd.f32 %v777, %v778
        %v780 = vsel %vm770, %v767, 0.0
        %v781 = vadd.f32 %v779, %v780
        %v782 = vsel %vm770, %v768, 0.0
        %v783 = vadd.f32 %v781, %v782
        %v784 = vsel %vm770, %v769, 0.0
        %v785 = vadd.f32 %v783, %v784
        %786 = vadd.xlane.f32.xlu0 %v785
        %v787 = vpop.xlane.xlu0 %786
        %v788 = vrot.slane %v787, 4
        %v789 = vadd.f32 %v787, %v788
        %v790 = vrot.slane %v789, 2
        %v791 = vadd.f32 %v789, %v790
        %v792 = vrot.slane %v791, 1
        %v793 = vadd.f32 %v791, %v792
        %s794 = vtos %v793
        %v795 = vrcp.pop 64.0
        %s796 = vtos %v795
        %s797 = smul.f32 %s794, %s796
        %v798 = vstv %s797
        %v799 = vsub.f32 %v762, %v798
        %v800 = vsub.f32 %v763, %v798
        %v801 = vsub.f32 %v764, %v798
        %v802 = vsub.f32 %v765, %v798
        %v803 = vsub.f32 %v766, %v798
        %v804 = vsub.f32 %v767, %v798
        %v805 = vsub.f32 %v768, %v798
        %v806 = vsub.f32 %v769, %v798
        %v807 = vld [vmem:[%s1] sm:$0xff]
        %v808 = vld [vmem:[%s1 + $0x8] sm:$0xff]
        %v809 = vld [vmem:[%s1 + $0x10] sm:$0xff]
        %v810 = vld [vmem:[%s1 + $0x18] sm:$0xff]
        %v811 = vld [vmem:[%s1 + $0x20] sm:$0xff]
        %v812 = vld [vmem:[%s1 + $0x28] sm:$0xff]
        %v813 = vld [vmem:[%s1 + $0x30] sm:$0xff]
        %v814 = vld [vmem:[%s1 + $0x38] sm:$0xff]
        %v815 = vmul.f32 %v807, %v799
        %v816 = vmul.f32 %v808, %v800
        %v817 = vmul.f32 %v809, %v801
        %v818 = vmul.f32 %v810, %v802
        %v819 = vmul.f32 %v811, %v803
        %v820 = vmul.f32 %v812, %v804
        %v821 = vmul.f32 %v813, %v805
        %v822 = vmul.f32 %v814, %v806
        %v823 = vadd.f32 %v815, %v816
        %v824 = vadd.f32 %v823, %v817
        %v825 = vadd.f32 %v824, %v818
        %v826 = vadd.f32 %v825, %v819
        %v827 = vadd.f32 %v826, %v820
        %v828 = vadd.f32 %v827, %v821
        %v829 = vadd.f32 %v828, %v822
        %v830 = vrot.slane %v829, 4
        %v831 = vadd.f32 %v829, %v830
        %v832 = vrot.slane %v831, 2
        %v833 = vadd.f32 %v831, %v832
        %v834 = vrot.slane %v833, 1
        %v835 = vadd.f32 %v833, %v834
        %v836 = vmul.f32 %v835, %v835
        %837 = vadd.xlane.f32.xlu0 %v836
        %v838 = vpop.xlane.xlu0 %837
        %v839 = vld [vmem:[%s2] sm:$0x1]
        %v840 = vmul.f32 %v836, %v839
        %vm841 = vcmask 1040384
        %v842 = vsel %vm841, %v840, 0.0
        %843 = vadd.xlane.f32.xlu0 %v842
        %v844 = vpop.xlane.xlu0 %843
        %v845 = vrcp.pop %v844
        %v846 = vmul.f32 %v838, %v845
        %v847 = vsub.f32 %v846, 1.0
        %848 = vst [vmem:[%s194] sm:$0x1] %v847
      $region40: #{loss_freq.1} parent=31 // pred_fallthru
        _
      %p849 = scmp.lt.s32.totalorder %s18, 1
      %s850 = scalar_select %p849, %s18, 1
      %s851 = scalar_lea.vmem %s3, %s850
      // Predicated region
      $region41: #{loss_freq.1} parent=31 // pred_check
        %p852 = pneg %p114
      $region42: #{loss_freq.1} parent=31 // pred_check_branch
        %854 = sbr.rel (%p852) target = $region44
      $region43: #{loss_freq.1} parent=31 // pred_region
        _
      $region44: #{loss_freq.1} parent=31 // pred_fallthru
        _
    $region32: #{loss_freq.1} parent=5 // pred_fallthru
      _
    %p855 = scmp.le.s32.totalorder 2, %s9
    // Predicated region
    $region45: #{loss_freq.1} parent=5 // pred_check
      %p856 = pneg %p855
    $region46: #{loss_freq.1} parent=5 // pred_check_branch
      %858 = sbr.rel (%p856) target = $region48
    $region47: #{loss_freq.1} parent=5 // pred_region
      %s859 = ssub.s32 %s9, 2
      // Predicated region
      $region49: #{loss_freq.1} parent=47 // pred_check
        %p860 = pneg %p120
      $region50: #{loss_freq.1} parent=47 // pred_check_branch
        %862 = sbr.rel (%p860) target = $region52
      $region51: #{loss_freq.1} parent=47 // pred_region
        %p863 = scmp.lt.s32.totalorder %s20, 1
        %s864 = scalar_select %p863, %s20, 1
        %s865 = scalar_lea.vmem %s3, %s864
      $region52: #{loss_freq.1} parent=47 // pred_fallthru
        _
    $region48: #{loss_freq.1} parent=5 // pred_fallthru
      _
  $region6: #{loss_freq.1} parent=0 // loop_footer
    %s13 = sadd.s32 1, %s9
  $region7: #{loss_freq.1} parent=0 // loop_footer_branch
    %8 = sbr.rel target = $region3
  $region8: #{loss_freq.1} parent=0 // loop_exit
    _

</llo_original>
